<compile_context>
chip_gen: v6e
topology: v6e:2x2x1
jax: 0.10.0
libtpu: 0.0.40
codegen_flags: <defaults>
</compile_context>

<pallas_src>
import functools

import jax
import jax.numpy as jnp
from jax import lax
from jax.experimental import pallas as pl
from jax.experimental.pallas import tpu as pltpu

_LN_EPS = 1e-5  # nn.LayerNorm default


# ----------------------------------------------------------------------------
# small helpers
# ----------------------------------------------------------------------------
def _round_up(x, m):
    return (x + m - 1) // m * m


def _largest_divisor_leq(n, target):
    target = max(1, min(n, target))
    for d in range(target, 0, -1):
        if n % d == 0:
            return d
    return 1


def _vmem_limit_bytes(window_bytes):
    # generous headroom, conservative cap (safe on v7x's 64 MiB VMEM)
    return int(min(max(2 * window_bytes + (4 << 20), 8 << 20), 48 << 20))


def _layer_norm_cols(g, gamma, beta, n_real):
    """LayerNorm over the last axis of `g` where only `n_real` columns are real.

    Padded columns of `g` are exactly zero by construction (zero-padded weight
    columns), and gamma/beta are zero on padded columns, so the result is exact
    LayerNorm over the real columns and zero on the padded ones.
    """
    n_pad = g.shape[-1]
    inv_n = 1.0 / float(n_real)
    mu = jnp.sum(g, axis=-1, keepdims=True) * inv_n
    d = g - mu
    ssq = jnp.sum(d * d, axis=-1, keepdims=True)
    # each padded (zero) column contributed exactly mu^2 to ssq -> remove it
    var = (ssq - float(n_pad - n_real) * mu * mu) * inv_n
    var = jnp.maximum(var, 0.0)
    return d * lax.rsqrt(var + _LN_EPS) * gamma + beta


def _pad_gate_mat(w, hidden, hidden_pad, rows_pad):
    """(rows, 4*hidden) -> (rows_pad, 4*hidden_pad); gate g lives at cols
    [g*hidden_pad, g*hidden_pad + hidden)."""
    rows = w.shape[0]
    w4 = w.reshape(rows, 4, hidden)
    w4 = jnp.pad(w4, ((0, rows_pad - rows), (0, 0), (0, hidden_pad - hidden)))
    return w4.reshape(rows_pad, 4 * hidden_pad)


def _pad_gate_vec(v, hidden, hidden_pad):
    v4 = v.reshape(4, hidden)
    v4 = jnp.pad(v4, ((0, 0), (0, hidden_pad - hidden)))
    return v4.reshape(1, 4 * hidden_pad)


# ----------------------------------------------------------------------------
# Kernel 1: input projection for the whole sequence (one big GEMM + LN + bias)
# ----------------------------------------------------------------------------
def _proj_kernel(x_ref, wx_ref, gamma_ref, beta_ref, bias_ref, gx_ref, *, n_real):
    x = x_ref[...].astype(jnp.bfloat16)                      # (R, Din_p) bf16
    g = jnp.dot(x, wx_ref[...], preferred_element_type=jnp.float32)
    gx_ref[...] = (_layer_norm_cols(g, gamma_ref[...], beta_ref[...], n_real)
                   + bias_ref[...])


def lstm_input_projection(x2d, wx, gamma, beta, bias, *, n_real, row_chunk):
    rows, din = x2d.shape
    four_hp = wx.shape[1]
    n_chunks = rows // row_chunk

    window = (2 * row_chunk * din * jnp.dtype(x2d.dtype).itemsize
              + 2 * row_chunk * four_hp * 4
              + wx.size * 2 + 3 * four_hp * 4)

    return pl.pallas_call(
        functools.partial(_proj_kernel, n_real=n_real),
        out_shape=jax.ShapeDtypeStruct((rows, four_hp), jnp.float32),
        grid=(n_chunks,),
        in_specs=[
            pl.BlockSpec((row_chunk, din), lambda s: (s, 0)),
            pl.BlockSpec((din, four_hp), lambda s: (0, 0)),
            pl.BlockSpec((1, four_hp), lambda s: (0, 0)),
            pl.BlockSpec((1, four_hp), lambda s: (0, 0)),
            pl.BlockSpec((1, four_hp), lambda s: (0, 0)),
        ],
        out_specs=pl.BlockSpec((row_chunk, four_hp), lambda s: (s, 0)),
        compiler_params=pltpu.CompilerParams(
            dimension_semantics=("parallel",),
            vmem_limit_bytes=_vmem_limit_bytes(window)),
    )(x2d, wx, gamma, beta, bias)


# ----------------------------------------------------------------------------
# Kernel 2: sequential recurrence; h/c live in VMEM scratch across grid steps
# ----------------------------------------------------------------------------
def _recurrent_kernel(gx_ref, h0_ref, c0_ref, wh_ref, gamma_ref, beta_ref,
                      y_ref, hT_ref, cT_ref,
                      h_scr, c_scr, *, hidden, hidden_pad):
    seq_chunk = gx_ref.shape[0]
    hp = hidden_pad
    n_real = 4 * hidden

    @pl.when(pl.program_id(1) == 0)          # first seq chunk of this batch chunk
    def _():
        h_scr[...] = h0_ref[...].astype(jnp.float32)
        c_scr[...] = c0_ref[...].astype(jnp.float32)

    # loop-invariant loads hoisted out of the per-timestep loop
    wh = wh_ref[...]                          # (Hp, 4*Hp) bf16
    gamma = gamma_ref[...]                    # (1, 4*Hp) f32
    beta = beta_ref[...]

    def step(s, carry):
        h_prev, c_prev = carry
        gh = jnp.dot(h_prev.astype(jnp.bfloat16), wh,
                     preferred_element_type=jnp.float32)          # (B, 4*Hp)
        gate = _layer_norm_cols(gh, gamma, beta, n_real) + gx_ref[s]
        i = jax.nn.sigmoid(gate[:, 0 * hp:1 * hp])                # lane-aligned slabs
        f = jax.nn.sigmoid(gate[:, 1 * hp:2 * hp])
        o = jax.nn.sigmoid(gate[:, 2 * hp:3 * hp])
        z = jnp.tanh(gate[:, 3 * hp:4 * hp])
        c_new = f * c_prev + i * z
        h_new = o * jnp.tanh(c_new)
        y_ref[s] = h_new.astype(y_ref.dtype)                      # lane-dense store
        return h_new, c_new

    h_fin, c_fin = lax.fori_loop(0, seq_chunk, step,
                                 (h_scr[...], c_scr[...]),
                                 unroll=seq_chunk <= 8)
    h_scr[...] = h_fin
    c_scr[...] = c_fin
    hT_ref[...] = h_fin
    cT_ref[...] = c_fin


def lstm_recurrence(gx, h0, c0, wh, gamma, beta, *, hidden, seq_chunk, batch_chunk):
    seq_len, bp, four_hp = gx.shape
    hp = four_hp // 4
    n_s = seq_len // seq_chunk
    n_b = bp // batch_chunk

    out_shapes = (
        jax.ShapeDtypeStruct((seq_len, bp, hp), jnp.float32),   # y
        jax.ShapeDtypeStruct((bp, hp), jnp.float32),            # h_T
        jax.ShapeDtypeStruct((bp, hp), jnp.float32),            # c_T
    )
    window = (2 * seq_chunk * batch_chunk * four_hp * 4
              + 2 * seq_chunk * batch_chunk * hp * 4
              + wh.size * 2 + 2 * four_hp * 4
              + 6 * batch_chunk * hp * 4)

    return pl.pallas_call(
        functools.partial(_recurrent_kernel, hidden=hidden, hidden_pad=hp),
        out_shape=out_shapes,
        grid=(n_b, n_s),
        in_specs=[
            pl.BlockSpec((seq_chunk, batch_chunk, four_hp), lambda b, s: (s, b, 0)),
            pl.BlockSpec((batch_chunk, hp), lambda b, s: (b, 0)),
            pl.BlockSpec((batch_chunk, hp), lambda b, s: (b, 0)),
            pl.BlockSpec((hp, four_hp), lambda b, s: (0, 0)),
            pl.BlockSpec((1, four_hp), lambda b, s: (0, 0)),
            pl.BlockSpec((1, four_hp), lambda b, s: (0, 0)),
        ],
        out_specs=[
            pl.BlockSpec((seq_chunk, batch_chunk, hp), lambda b, s: (s, b, 0)),
            pl.BlockSpec((batch_chunk, hp), lambda b, s: (b, 0)),
            pl.BlockSpec((batch_chunk, hp), lambda b, s: (b, 0)),
        ],
        scratch_shapes=[
            pltpu.VMEM((batch_chunk, hp), jnp.float32),   # h state
            pltpu.VMEM((batch_chunk, hp), jnp.float32),   # c state
        ],
        compiler_params=pltpu.CompilerParams(
            dimension_semantics=("parallel", "arbitrary"),
            vmem_limit_bytes=_vmem_limit_bytes(window)),
    )(gx, h0, c0, wh, gamma, beta)


# ----------------------------------------------------------------------------
# One LSTM+LN layer = hoisted projection GEMM + streaming recurrence
# ----------------------------------------------------------------------------
def lstm_layer(x_pad, h0_pad, c0_pad, wx_pad, wh_pad, bias_pad,
               gxg_pad, gxb_pad, ghg_pad, ghb_pad, *,
               hidden, seq_chunk, batch_chunk):
    seq_len, bp, din = x_pad.shape
    four_hp = wx_pad.shape[1]
    n_real = 4 * hidden

    # (1) input projection for the whole sequence: gx = LN(x @ wx) + bias
    rows = seq_len * bp
    row_chunk = bp * _largest_divisor_leq(seq_len, max(1, 512 // bp))
    x2d = x_pad.reshape(rows, din)
    gx2d = lstm_input_projection(x2d, wx_pad, gxg_pad, gxb_pad, bias_pad,
                                 n_real=n_real, row_chunk=row_chunk)
    gx = gx2d.reshape(seq_len, bp, four_hp)

    # (2) sequential recurrence (only h @ wh + LN + gates per timestep)
    return lstm_recurrence(gx, h0_pad, c0_pad, wh_pad, ghg_pad, ghb_pad,
                           hidden=hidden, seq_chunk=seq_chunk,
                           batch_chunk=batch_chunk)


# ----------------------------------------------------------------------------
# Parameter construction (mirrors the PyTorch __init__)
# ----------------------------------------------------------------------------
def init_lstm_params(key, input_size, hidden_size, num_layers):
    ortho = jax.nn.initializers.orthogonal()
    dims = [input_size] + [hidden_size] * num_layers
    keys = jax.random.split(key, 2 * num_layers + 1)

    wx, wh = [], []
    for l in range(num_layers):
        wx.append(ortho(keys[2 * l], (dims[l], dims[l + 1] * 4), jnp.float32))
        wh.append(ortho(keys[2 * l + 1], (hidden_size, hidden_size * 4), jnp.float32))
    bias = ortho(keys[-1], (num_layers, hidden_size * 4), jnp.float32)

    # nn.LayerNorm defaults: weight = 1, bias = 0 ; one LN per (layer, branch)
    ln = [(jnp.ones((hidden_size * 4,), jnp.float32),
           jnp.zeros((hidden_size * 4,), jnp.float32))
          for _ in range(2 * num_layers)]

    return {"wx": wx, "wh": wh, "bias": bias, "ln": ln,
            "hidden_size": hidden_size, "num_layers": num_layers}


# ----------------------------------------------------------------------------
# Full forward (matches LSTM.forward; dropout=0.0 default)
# ----------------------------------------------------------------------------
def lstm_forward(params, inputs, prev_state=None, seq_chunk=None):
    seq_len, batch, in_dim = inputs.shape
    num_layers = params["num_layers"]
    hidden = params["hidden_size"]

    bp = _round_up(max(batch, 8), 8)        # sublane-pad the batch
    hp = _round_up(hidden, 128)             # lane-pad the hidden dim (gate slabs)
    din0 = _round_up(in_dim, 128)           # lane-pad layer-0 input features

    if seq_chunk is None:
        seq_chunk = 32
    seq_chunk = _largest_divisor_leq(seq_len, seq_chunk)

    # one batch chunk per TensorCore when the padded batch allows it (v7x megacore)
    batch_chunk = bp // 2 if (bp >= 16 and bp % 16 == 0) else bp

    # previous state
    if prev_state is None:
        H = jnp.zeros((num_layers, batch, hidden), jnp.float32)
        C = jnp.zeros((num_layers, batch, hidden), jnp.float32)
    elif (isinstance(prev_state, (list, tuple)) and len(prev_state)
          and isinstance(prev_state[0], dict)):
        H = jnp.concatenate([d["h"] for d in prev_state], axis=1).astype(jnp.float32)
        C = jnp.concatenate([d["c"] for d in prev_state], axis=1).astype(jnp.float32)
    else:
        H, C = prev_state
        H = H.astype(jnp.float32)
        C = C.astype(jnp.float32)

    H = jnp.pad(H, ((0, 0), (0, bp - batch), (0, hp - hidden)))
    C = jnp.pad(C, ((0, 0), (0, bp - batch), (0, hp - hidden)))
    x = jnp.pad(inputs.astype(jnp.float32),
                ((0, 0), (0, bp - batch), (0, din0 - in_dim)))

    h_list, c_list = [], []
    for l in range(num_layers):
        din_lp = din0 if l == 0 else hp

        # bf16 weights (MXU-native, half the VMEM residency); f32 LN/bias params
        wx_p = _pad_gate_mat(params["wx"][l], hidden, hp, din_lp).astype(jnp.bfloat16)
        wh_p = _pad_gate_mat(params["wh"][l], hidden, hp, hp).astype(jnp.bfloat16)
        bias_p = _pad_gate_vec(params["bias"][l], hidden, hp)
        gxg, gxb = params["ln"][2 * l]
        ghg, ghb = params["ln"][2 * l + 1]
        gxg_p = _pad_gate_vec(gxg, hidden, hp)
        gxb_p = _pad_gate_vec(gxb, hidden, hp)
        ghg_p = _pad_gate_vec(ghg, hidden, hp)
        ghb_p = _pad_gate_vec(ghb, hidden, hp)

        y, hT, cT = lstm_layer(
            x, H[l], C[l], wx_p, wh_p, bias_p,
            gxg_p, gxb_p, ghg_p, ghb_p,
            hidden=hidden, seq_chunk=seq_chunk, batch_chunk=batch_chunk)
        x = y                                   # already padded for the next layer
        h_list.append(hT[:batch, :hidden])
        c_list.append(cT[:batch, :hidden])
        # TODO(synk): inter-layer dropout not applied (module default dropout=0.0);
        # bf16 inter-layer activations / layer fusion left for a further pass.

    out = x[:, :batch, :hidden].astype(inputs.dtype)
    h_n = jnp.stack(h_list, axis=0)             # (num_layers, batch, hidden)
    c_n = jnp.stack(c_list, axis=0)

    # per-batch-element dict packaging, mirroring the PyTorch module
    next_state = [{"h": h_n[:, b:b + 1, :], "c": c_n[:, b:b + 1, :]}
                  for b in range(batch)]
    return out, next_state


# ----------------------------------------------------------------------------
# Pure-JAX reference of the module's forward (for a sanity check only)
# ----------------------------------------------------------------------------
def _lstm_forward_ref(params, inputs):
    seq_len, batch, _ = inputs.shape
    L, hid = params["num_layers"], params["hidden_size"]

    def ln(v, g, b):
        mu = jnp.mean(v, -1, keepdims=True)
        var = jnp.mean((v - mu) ** 2, -1, keepdims=True)
        return (v - mu) * lax.rsqrt(var + _LN_EPS) * g + b

    x = inputs.astype(jnp.float32)
    hs, cs = [], []
    for l in range(L):
        h = jnp.zeros((batch, hid), jnp.float32)
        c = jnp.zeros((batch, hid), jnp.float32)
        gxg, gxb = params["ln"][2 * l]
        ghg, ghb = params["ln"][2 * l + 1]
        ys = []
        for s in range(seq_len):
            gate = (ln(x[s] @ params["wx"][l], gxg, gxb)
                    + ln(h @ params["wh"][l], ghg, ghb)
                    + params["bias"][l])
            i, f, o, z = jnp.split(gate, 4, axis=1)
            i, f, o = jax.nn.sigmoid(i), jax.nn.sigmoid(f), jax.nn.sigmoid(o)
            z = jnp.tanh(z)
            c = f * c + i * z
            h = o * jnp.tanh(c)
            ys.append(h)
        x = jnp.stack(ys, 0)
        hs.append(h)
        cs.append(c)
    return x, jnp.stack(hs, 0), jnp.stack(cs, 0)


# ----------------------------------------------------------------------------
# Main
# ----------------------------------------------------------------------------
if __name__ == "__main__":
    seq_len, batch, input_size, hidden_size, num_layers = 8, 2, 16, 32, 2

    key = jax.random.PRNGKey(0)
    k_param, k_in = jax.random.split(key)
    params = init_lstm_params(k_param, input_size, hidden_size, num_layers)
    inputs = jax.random.normal(k_in, (seq_len, batch, input_size), jnp.float32)

    # seq_chunk=4 -> 2 sequence chunks, exercising the cross-grid-step h/c carry
    out_x, next_state = lstm_forward(params, inputs, prev_state=None, seq_chunk=4)
    out_x = jax.block_until_ready(out_x)
    for st in next_state:
        jax.block_until_ready(st["h"])
        jax.block_until_ready(st["c"])

    assert out_x.shape == (seq_len, batch, hidden_size)
    assert len(next_state) == batch
    assert next_state[0]["h"].shape == (num_layers, 1, hidden_size)

    # numerical sanity vs. the pure-JAX module semantics (bf16 matmul tolerance)
    ref_x, ref_h, ref_c = _lstm_forward_ref(params, inputs)
    h_n = jnp.concatenate([st["h"] for st in next_state], axis=1)
    c_n = jnp.concatenate([st["c"] for st in next_state], axis=1)
    err = max(float(jnp.max(jnp.abs(out_x - ref_x))),
              float(jnp.max(jnp.abs(h_n - ref_h))),
              float(jnp.max(jnp.abs(c_n - ref_c))))
    assert err < 7.5e-2, f"mismatch vs reference: max abs err = {err}"

    print("KERNEL_OK")
</pallas_src>

<mosaic_0001>
module attributes {stable_mosaic.version = 11 : i64} {
  func.func @_proj_kernel(%arg0: i32, %arg1: memref<64x128xf32, #tpu.memory_space<vmem>>, %arg2: memref<128x512xbf16, #tpu.memory_space<vmem>>, %arg3: memref<1x512xf32, #tpu.memory_space<vmem>>, %arg4: memref<1x512xf32, #tpu.memory_space<vmem>>, %arg5: memref<1x512xf32, #tpu.memory_space<vmem>>, %arg6: memref<64x512xf32, #tpu.memory_space<vmem>>) attributes {dimension_semantics = [#tpu.dimension_semantics<parallel>], iteration_bounds = array<i64: 1>, scalar_prefetch = 0 : i64, scratch_operands = 0 : i64, tpu.core_type = #tpu.core_type<tc>, window_params = [{transform_indices = @transform_0, window_bounds = array<i64: 64, 128>}, {pipeline_mode = #tpu.pipeline_mode<synchronous>, transform_indices = @transform_1, window_bounds = array<i64: 128, 512>}, {pipeline_mode = #tpu.pipeline_mode<synchronous>, transform_indices = @transform_2, window_bounds = array<i64: 1, 512>}, {pipeline_mode = #tpu.pipeline_mode<synchronous>, transform_indices = @transform_3, window_bounds = array<i64: 1, 512>}, {pipeline_mode = #tpu.pipeline_mode<synchronous>, transform_indices = @transform_4, window_bounds = array<i64: 1, 512>}, {transform_indices = @transform_5, window_bounds = array<i64: 64, 512>}]} {
    %c0 = arith.constant 0 : index
    %c0_0 = arith.constant 0 : index
    %0 = vector.load %arg1[%c0, %c0_0] : memref<64x128xf32, #tpu.memory_space<vmem>>, vector<64x128xf32>
    %1 = arith.truncf %0 : vector<64x128xf32> to vector<64x128xbf16>
    %c0_1 = arith.constant 0 : index
    %c0_2 = arith.constant 0 : index
    %2 = vector.load %arg2[%c0_1, %c0_2] : memref<128x512xbf16, #tpu.memory_space<vmem>>, vector<128x512xbf16>
    %cst = arith.constant dense<0.000000e+00> : vector<64x512xf32>
    %3 = tpu.matmul %1, %2, %cst {dimension_numbers = #tpu.dot_dimension_numbers<[1], [0], [0], [1], [0, 0, 1, 1], [], []>} : vector<64x128xbf16>, vector<128x512xbf16>, vector<64x512xf32> -> vector<64x512xf32>
    %c0_3 = arith.constant 0 : index
    %c0_4 = arith.constant 0 : index
    %4 = vector.load %arg3[%c0_3, %c0_4] : memref<1x512xf32, #tpu.memory_space<vmem>>, vector<1x512xf32>
    %c0_5 = arith.constant 0 : index
    %c0_6 = arith.constant 0 : index
    %5 = vector.load %arg4[%c0_5, %c0_6] : memref<1x512xf32, #tpu.memory_space<vmem>>, vector<1x512xf32>
    %cst_7 = arith.constant dense<0.000000e+00> : vector<64xf32>
    %6 = vector.multi_reduction <add>, %3, %cst_7 [1] : vector<64x512xf32> to vector<64xf32>
    %7 = vector.shape_cast %6 : vector<64xf32> to vector<64x1xf32>
    %cst_8 = arith.constant 7.812500e-03 : f32
    %8 = vector.broadcast %cst_8 : f32 to vector<64x1xf32>
    %9 = arith.mulf %7, %8 : vector<64x1xf32>
    %10 = vector.broadcast %9 : vector<64x1xf32> to vector<64x512xf32>
    %11 = arith.subf %3, %10 : vector<64x512xf32>
    %12 = arith.mulf %11, %11 : vector<64x512xf32>
    %cst_9 = arith.constant dense<0.000000e+00> : vector<64xf32>
    %13 = vector.multi_reduction <add>, %12, %cst_9 [1] : vector<64x512xf32> to vector<64xf32>
    %14 = vector.shape_cast %13 : vector<64xf32> to vector<64x1xf32>
    %cst_10 = arith.constant 3.840000e+02 : f32
    %15 = vector.broadcast %cst_10 : f32 to vector<64x1xf32>
    %16 = arith.mulf %15, %9 : vector<64x1xf32>
    %17 = arith.mulf %16, %9 : vector<64x1xf32>
    %18 = arith.subf %14, %17 : vector<64x1xf32>
    %cst_11 = arith.constant 7.812500e-03 : f32
    %19 = vector.broadcast %cst_11 : f32 to vector<64x1xf32>
    %20 = arith.mulf %18, %19 : vector<64x1xf32>
    %cst_12 = arith.constant 0.000000e+00 : f32
    %21 = vector.broadcast %cst_12 : f32 to vector<64x1xf32>
    %22 = arith.maximumf %20, %21 : vector<64x1xf32>
    %cst_13 = arith.constant 9.99999974E-6 : f32
    %23 = vector.broadcast %cst_13 : f32 to vector<64x1xf32>
    %24 = arith.addf %22, %23 : vector<64x1xf32>
    %25 = math.rsqrt %24 : vector<64x1xf32>
    %26 = vector.broadcast %25 : vector<64x1xf32> to vector<64x512xf32>
    %27 = arith.mulf %11, %26 : vector<64x512xf32>
    %28 = vector.broadcast %4 : vector<1x512xf32> to vector<64x512xf32>
    %29 = arith.mulf %27, %28 : vector<64x512xf32>
    %30 = vector.broadcast %5 : vector<1x512xf32> to vector<64x512xf32>
    %31 = arith.addf %29, %30 : vector<64x512xf32>
    %c0_14 = arith.constant 0 : index
    %c0_15 = arith.constant 0 : index
    %32 = vector.load %arg5[%c0_14, %c0_15] : memref<1x512xf32, #tpu.memory_space<vmem>>, vector<1x512xf32>
    %33 = vector.broadcast %32 : vector<1x512xf32> to vector<64x512xf32>
    %34 = arith.addf %31, %33 : vector<64x512xf32>
    %c0_16 = arith.constant 0 : index
    %c0_17 = arith.constant 0 : index
    %35 = vector.load %arg6[%c0_16, %c0_17] : memref<64x512xf32, #tpu.memory_space<vmem>>, vector<64x512xf32>
    tpu.vector_store %arg6[%c0_16, %c0_17], %34 {strides = array<i32>} : memref<64x512xf32, #tpu.memory_space<vmem>>, vector<64x512xf32>,
    return
  }
  func.func @transform_0(%arg0: i32) -> (i32, i32) {
    %c0_i32 = arith.constant 0 : i32
    %c0_i32_0 = arith.constant 0 : i32
    return %arg0, %c0_i32 : i32, i32
  }
  func.func @transform_1(%arg0: i32) -> (i32, i32) {
    %c0_i32 = arith.constant 0 : i32
    %c0_i32_0 = arith.constant 0 : i32
    %c0_i32_1 = arith.constant 0 : i32
    return %c0_i32, %c0_i32_0 : i32, i32
  }
  func.func @transform_2(%arg0: i32) -> (i32, i32) {
    %c0_i32 = arith.constant 0 : i32
    %c0_i32_0 = arith.constant 0 : i32
    %c0_i32_1 = arith.constant 0 : i32
    return %c0_i32, %c0_i32_0 : i32, i32
  }
  func.func @transform_3(%arg0: i32) -> (i32, i32) {
    %c0_i32 = arith.constant 0 : i32
    %c0_i32_0 = arith.constant 0 : i32
    %c0_i32_1 = arith.constant 0 : i32
    return %c0_i32, %c0_i32_0 : i32, i32
  }
  func.func @transform_4(%arg0: i32) -> (i32, i32) {
    %c0_i32 = arith.constant 0 : i32
    %c0_i32_0 = arith.constant 0 : i32
    %c0_i32_1 = arith.constant 0 : i32
    return %c0_i32, %c0_i32_0 : i32, i32
  }
  func.func @transform_5(%arg0: i32) -> (i32, i32) {
    %c0_i32 = arith.constant 0 : i32
    %c0_i32_0 = arith.constant 0 : i32
    return %arg0, %c0_i32 : i32, i32
  }
}

</mosaic_0001>

<llo_original>
// kernel: tpu_custom_call.1
$region0: #{tpu_custom_call.1}
  #allocation0 [shape = 'u32[]', space=smem, size = 0x4, offset = 0x4, fixed_abs, tag = 'smem constant byte address 0x4 - core index']
  #allocation1 [shape = 'u32[144,128]{1,0:T(1,128)}', space=vmem, size = 0x12000, scoped, tag = 'internal scratch']
  %s0 = inlined_call_operand.hbm [shape: f32[64,128], index: 0, kind: input, shape index: {}]
  %s1 = inlined_call_operand.hbm [shape: bf16[128,512], index: 1, kind: input, shape index: {}]
  %s2 = inlined_call_operand.hbm [shape: f32[1,512], index: 2, kind: input, shape index: {}]
  %s3 = inlined_call_operand.vmem [shape: f32[1,512], index: 3, kind: input, shape index: {}]
  %s4 = inlined_call_operand.hbm [shape: f32[1,512], index: 4, kind: input, shape index: {}]
  %s5 = inlined_call_operand.hbm [shape: f32[64,512], index: 5, kind: output, shape index: {}]
  %s6 = sld [smem:[#allocation0]]
  $region46: #{tpu_custom_call.1} parent=0
    _
  %s8 = ssub.s32 1, %s6
  %s9 = scalar_select 0, %s8, %s6
  $region1: #{tpu_custom_call.1} parent=0
    #allocation2 [shape = 'u8[32768]{0}', space=vmem, size = 0x8000, scoped, tag = 'input window, operand 0, single buffered']
    #allocation3 [shape = 's32[1]{0}', space=sflag, size = 0x4, scoped, tag = 'scoped memory for tpu_custom_call.1']
    #allocation4 [shape = 's32[1]{0}', space=sflag, size = 0x4, scoped, tag = 'scoped memory for tpu_custom_call.1']
    #allocation5 [shape = 'u8[131072]{0}', space=vmem, size = 0x20000, scoped, tag = 'input window, operand 1, single buffered']
    #allocation6 [shape = 's32[1]{0}', space=sflag, size = 0x4, scoped, tag = 'scoped memory for tpu_custom_call.1']
    #allocation7 [shape = 'u8[2048]{0}', space=vmem, size = 0x800, scoped, tag = 'input window, operand 2, single buffered']
    #allocation8 [shape = 'u8[2048]{0}', space=vmem, size = 0x800, scoped, tag = 'input window, operand 4, single buffered']
    #allocation9 [shape = 's32[1]{0}', space=sflag, size = 0x4, scoped, tag = 'scoped memory for tpu_custom_call.1']
    #allocation10 [shape = 'u8[131072]{0}', space=vmem, size = 0x20000, scoped, tag = 'output window, operand 0, single buffered']
    %10 = vsyncpa [#allocation3], 0
    %11 = vsyncpa [#allocation6], 0
    %12 = vsyncpa [#allocation9], 0
    %13 = vsyncpa [#allocation4], 0
    // Predicated region
    $region2: #{tpu_custom_call.1} parent=1 // pred_check
      _
    $region3: #{tpu_custom_call.1} parent=1 // pred_check_branch
      %15 = sbr.rel (0) target = $region5
    $region4: #{tpu_custom_call.1} parent=1 // pred_region
      %s17 = ssub.s32 1024, 1024
      %18 = vsyncadd [#allocation3], %s17
      %s19 = sshll.u32 [#allocation2], 4
      %s20 = int_to_ptr.vmem [resolvable:$true] %s19
      %25 = dma.hbm_to_vmem [thread:$0]  %s0, 1024, %s20, [#allocation3], 128, 128, 8
    $region5: #{tpu_custom_call.1} parent=1 // pred_fallthru
      _
    // Predicated region
    $region6: #{tpu_custom_call.1} parent=1 // pred_check
      _
    $region7: #{tpu_custom_call.1} parent=1 // pred_check_branch
      %27 = sbr.rel (0) target = $region9
    $region8: #{tpu_custom_call.1} parent=1 // pred_region
      %s29 = ssub.s32 4096, 4096
      %30 = vsyncadd [#allocation6], %s29
      %s31 = sshll.u32 [#allocation5], 4
      %s32 = int_to_ptr.vmem [resolvable:$true] %s31
      %37 = dma.hbm_to_vmem [thread:$0]  %s1, 4096, %s32, [#allocation6], 256, 256, 16
    $region9: #{tpu_custom_call.1} parent=1 // pred_fallthru
      _
    // Predicated region
    $region10: #{tpu_custom_call.1} parent=1 // pred_check
      _
    $region11: #{tpu_custom_call.1} parent=1 // pred_check_branch
      %39 = sbr.rel (0) target = $region13
    $region12: #{tpu_custom_call.1} parent=1 // pred_region
      %s41 = ssub.s32 64, 64
      %42 = vsyncadd [#allocation6], %s41
      %s44 = sshll.u32 [#allocation7], 4
      %s45 = int_to_ptr.vmem [resolvable:$true] %s44
      %47 = dma.hbm_to_vmem [thread:$0]  %s2, 64, %s45, [#allocation6]
    $region13: #{tpu_custom_call.1} parent=1 // pred_fallthru
      _
    // Predicated region
    $region14: #{tpu_custom_call.1} parent=1 // pred_check
      _
    $region15: #{tpu_custom_call.1} parent=1 // pred_check_branch
      %49 = sbr.rel (0) target = $region17
    $region16: #{tpu_custom_call.1} parent=1 // pred_region
      _
    $region17: #{tpu_custom_call.1} parent=1 // pred_fallthru
      _
    // Predicated region
    $region18: #{tpu_custom_call.1} parent=1 // pred_check
      _
    $region19: #{tpu_custom_call.1} parent=1 // pred_check_branch
      %51 = sbr.rel (0) target = $region21
    $region20: #{tpu_custom_call.1} parent=1 // pred_region
      %s53 = ssub.s32 64, 64
      %54 = vsyncadd [#allocation9], %s53
      %s56 = sshll.u32 [#allocation8], 4
      %s57 = int_to_ptr.vmem [resolvable:$true] %s56
      %59 = dma.hbm_to_vmem [thread:$0]  %s4, 64, %s57, [#allocation9]
    $region21: #{tpu_custom_call.1} parent=1 // pred_fallthru
      _
    // Predicated region
    $region22: #{tpu_custom_call.1} parent=1 // pred_check
      _
    $region23: #{tpu_custom_call.1} parent=1 // pred_check_branch
      %61 = sbr.rel (0) target = $region25
    $region24: #{tpu_custom_call.1} parent=1 // pred_region
      %62 = dma.done [#allocation3], 1024
    $region25: #{tpu_custom_call.1} parent=1 // pred_fallthru
      _
    // Predicated region
    $region26: #{tpu_custom_call.1} parent=1 // pred_check
      _
    $region27: #{tpu_custom_call.1} parent=1 // pred_check_branch
      %64 = sbr.rel (0) target = $region29
    $region28: #{tpu_custom_call.1} parent=1 // pred_region
      %65 = dma.done [#allocation6], 4096
    $region29: #{tpu_custom_call.1} parent=1 // pred_fallthru
      _
    // Predicated region
    $region30: #{tpu_custom_call.1} parent=1 // pred_check
      _
    $region31: #{tpu_custom_call.1} parent=1 // pred_check_branch
      %67 = sbr.rel (0) target = $region33
    $region32: #{tpu_custom_call.1} parent=1 // pred_region
      %68 = dma.done [#allocation6], 64
    $region33: #{tpu_custom_call.1} parent=1 // pred_fallthru
      _
    // Predicated region
    $region34: #{tpu_custom_call.1} parent=1 // pred_check
      _
    $region35: #{tpu_custom_call.1} parent=1 // pred_check_branch
      %70 = sbr.rel (0) target = $region37
    $region36: #{tpu_custom_call.1} parent=1 // pred_region
      %71 = dma.done [#allocation9], 64
    $region37: #{tpu_custom_call.1} parent=1 // pred_fallthru
      _
    %v73 = vld [vmem:[#allocation2] sm:$0xff]
    %v74 = vld [vmem:[#allocation2 + $0x8] sm:$0xff]
    %v75 = vld [vmem:[#allocation2 + $0x10] sm:$0xff]
    %v76 = vld [vmem:[#allocation2 + $0x18] sm:$0xff]
    %v77 = vld [vmem:[#allocation2 + $0x20] sm:$0xff]
    %v78 = vld [vmem:[#allocation2 + $0x28] sm:$0xff]
    %v79 = vld [vmem:[#allocation2 + $0x30] sm:$0xff]
    %v80 = vld [vmem:[#allocation2 + $0x38] sm:$0xff]
    %v81 = vpack.c.bf16 %v74, %v73
    %v82 = vpack.c.bf16 %v76, %v75
    %v83 = vpack.c.bf16 %v78, %v77
    %v84 = vpack.c.bf16 %v80, %v79
    %v85 = vld [vmem:[#allocation5] sm:$0xff]
    %v86 = vld [vmem:[#allocation5 + $0x8] sm:$0xff]
    %v87 = vld [vmem:[#allocation5 + $0x10] sm:$0xff]
    %v88 = vld [vmem:[#allocation5 + $0x18] sm:$0xff]
    %v89 = vld [vmem:[#allocation5 + $0x20] sm:$0xff]
    %v90 = vld [vmem:[#allocation5 + $0x28] sm:$0xff]
    %v91 = vld [vmem:[#allocation5 + $0x30] sm:$0xff]
    %v92 = vld [vmem:[#allocation5 + $0x38] sm:$0xff]
    %v93 = vld [vmem:[#allocation5 + $0x40] sm:$0xff]
    %v94 = vld [vmem:[#allocation5 + $0x48] sm:$0xff]
    %v95 = vld [vmem:[#allocation5 + $0x50] sm:$0xff]
    %v96 = vld [vmem:[#allocation5 + $0x58] sm:$0xff]
    %v97 = vld [vmem:[#allocation5 + $0x60] sm:$0xff]
    %v98 = vld [vmem:[#allocation5 + $0x68] sm:$0xff]
    %v99 = vld [vmem:[#allocation5 + $0x70] sm:$0xff]
    %v100 = vld [vmem:[#allocation5 + $0x78] sm:$0xff]
    %v101 = vld [vmem:[#allocation5 + $0x80] sm:$0xff]
    %v102 = vld [vmem:[#allocation5 + $0x88] sm:$0xff]
    %v103 = vld [vmem:[#allocation5 + $0x90] sm:$0xff]
    %v104 = vld [vmem:[#allocation5 + $0x98] sm:$0xff]
    %v105 = vld [vmem:[#allocation5 + $0xa0] sm:$0xff]
    %v106 = vld [vmem:[#allocation5 + $0xa8] sm:$0xff]
    %v107 = vld [vmem:[#allocation5 + $0xb0] sm:$0xff]
    %v108 = vld [vmem:[#allocation5 + $0xb8] sm:$0xff]
    %v109 = vld [vmem:[#allocation5 + $0xc0] sm:$0xff]
    %v110 = vld [vmem:[#allocation5 + $0xc8] sm:$0xff]
    %v111 = vld [vmem:[#allocation5 + $0xd0] sm:$0xff]
    %v112 = vld [vmem:[#allocation5 + $0xd8] sm:$0xff]
    %v113 = vld [vmem:[#allocation5 + $0xe0] sm:$0xff]
    %v114 = vld [vmem:[#allocation5 + $0xe8] sm:$0xff]
    %v115 = vld [vmem:[#allocation5 + $0xf0] sm:$0xff]
    %v116 = vld [vmem:[#allocation5 + $0xf8] sm:$0xff]
    %v149 = vunpack.c.l.b16 %v85
    %v150 = vunpack.c.h.b16 %v85
    %v151 = vunpack.c.l.b16 %v86
    %v152 = vunpack.c.h.b16 %v86
    %v153 = vunpack.c.l.b16 %v87
    %v154 = vunpack.c.h.b16 %v87
    %v155 = vunpack.c.l.b16 %v88
    %v156 = vunpack.c.h.b16 %v88
    %v157 = vunpack.c.l.b16 %v89
    %v158 = vunpack.c.h.b16 %v89
    %v159 = vunpack.c.l.b16 %v90
    %v160 = vunpack.c.h.b16 %v90
    %v161 = vunpack.c.l.b16 %v91
    %v162 = vunpack.c.h.b16 %v91
    %v163 = vunpack.c.l.b16 %v92
    %v164 = vunpack.c.h.b16 %v92
    %v165 = vunpack.c.l.b16 %v93
    %v166 = vunpack.c.h.b16 %v93
    %v167 = vunpack.c.l.b16 %v94
    %v168 = vunpack.c.h.b16 %v94
    %v169 = vunpack.c.l.b16 %v95
    %v170 = vunpack.c.h.b16 %v95
    %v171 = vunpack.c.l.b16 %v96
    %v172 = vunpack.c.h.b16 %v96
    %v173 = vunpack.c.l.b16 %v97
    %v174 = vunpack.c.h.b16 %v97
    %v175 = vunpack.c.l.b16 %v98
    %v176 = vunpack.c.h.b16 %v98
    %v177 = vunpack.c.l.b16 %v99
    %v178 = vunpack.c.h.b16 %v99
    %v179 = vunpack.c.l.b16 %v100
    %v180 = vunpack.c.h.b16 %v100
    %v181 = vunpack.c.l.b16 %v101
    %v182 = vunpack.c.h.b16 %v101
    %v183 = vunpack.c.l.b16 %v102
    %v184 = vunpack.c.h.b16 %v102
    %v185 = vunpack.c.l.b16 %v103
    %v186 = vunpack.c.h.b16 %v103
    %v187 = vunpack.c.l.b16 %v104
    %v188 = vunpack.c.h.b16 %v104
    %v189 = vunpack.c.l.b16 %v105
    %v190 = vunpack.c.h.b16 %v105
    %v191 = vunpack.c.l.b16 %v106
    %v192 = vunpack.c.h.b16 %v106
    %v193 = vunpack.c.l.b16 %v107
    %v194 = vunpack.c.h.b16 %v107
    %v195 = vunpack.c.l.b16 %v108
    %v196 = vunpack.c.h.b16 %v108
    %v197 = vunpack.c.l.b16 %v109
    %v198 = vunpack.c.h.b16 %v109
    %v199 = vunpack.c.l.b16 %v110
    %v200 = vunpack.c.h.b16 %v110
    %v201 = vunpack.c.l.b16 %v111
    %v202 = vunpack.c.h.b16 %v111
    %v203 = vunpack.c.l.b16 %v112
    %v204 = vunpack.c.h.b16 %v112
    %v205 = vunpack.c.l.b16 %v113
    %v206 = vunpack.c.h.b16 %v113
    %v207 = vunpack.c.l.b16 %v114
    %v208 = vunpack.c.h.b16 %v114
    %v209 = vunpack.c.l.b16 %v115
    %v210 = vunpack.c.h.b16 %v115
    %v211 = vunpack.c.l.b16 %v116
    %v212 = vunpack.c.h.b16 %v116
    %v213 = vpack.c.b16 %v153, %v149
    %v214 = vpack.c.b16 %v154, %v150
    %v215 = vpack.c.b16 %v155, %v151
    %v216 = vpack.c.b16 %v156, %v152
    %v217 = vpack.c.b16 %v161, %v157
    %v218 = vpack.c.b16 %v162, %v158
    %v219 = vpack.c.b16 %v163, %v159
    %v220 = vpack.c.b16 %v164, %v160
    %v221 = vpack.c.b16 %v169, %v165
    %v222 = vpack.c.b16 %v170, %v166
    %v223 = vpack.c.b16 %v171, %v167
    %v224 = vpack.c.b16 %v172, %v168
    %v225 = vpack.c.b16 %v177, %v173
    %v226 = vpack.c.b16 %v178, %v174
    %v227 = vpack.c.b16 %v179, %v175
    %v228 = vpack.c.b16 %v180, %v176
    %v229 = vpack.c.b16 %v185, %v181
    %v230 = vpack.c.b16 %v186, %v182
    %v231 = vpack.c.b16 %v187, %v183
    %v232 = vpack.c.b16 %v188, %v184
    %v233 = vpack.c.b16 %v193, %v189
    %v234 = vpack.c.b16 %v194, %v190
    %v235 = vpack.c.b16 %v195, %v191
    %v236 = vpack.c.b16 %v196, %v192
    %v237 = vpack.c.b16 %v201, %v197
    %v238 = vpack.c.b16 %v202, %v198
    %v239 = vpack.c.b16 %v203, %v199
    %v240 = vpack.c.b16 %v204, %v200
    %v241 = vpack.c.b16 %v209, %v205
    %v242 = vpack.c.b16 %v210, %v206
    %v243 = vpack.c.b16 %v211, %v207
    %v244 = vpack.c.b16 %v212, %v208
    %277 = vmatprep.subr.bf16.mxu0 %v242
    %278 = vmatpush1.bf16.msra.mxu0 %v241
    %279 = vmatprep.subr.bf16.mxu0 %v238
    %280 = vmatpush1.bf16.msra.mxu0 %v237
    %281 = vmatprep.subr.bf16.mxu0 %v234
    %282 = vmatpush1.bf16.msra.mxu0 %v233
    %283 = vmatprep.subr.bf16.mxu0 %v230
    %284 = vmatpush1.bf16.msra.mxu0 %v229
    %285 = vmatprep.subr.bf16.mxu0 %v226
    %286 = vmatpush1.bf16.msra.mxu0 %v225
    %287 = vmatprep.subr.bf16.mxu0 %v222
    %288 = vmatpush1.bf16.msra.mxu0 %v221
    %289 = vmatprep.subr.bf16.mxu0 %v218
    %290 = vmatpush1.bf16.msra.mxu0 %v217
    %291 = vmatprep.subr.bf16.mxu0 %v214
    %292 = vmatpush1.bf16.msra.mxu0 %v213
    %293 = vmatprep.subr.bf16.mxu0 0
    %294 = vmatpush2.bf16.msra.mxu0 0
    %295 = vmatprep.subr.bf16.mxu0 0
    %296 = vmatpush2.bf16.msra.mxu0 0
    %297 = vmatprep.subr.bf16.mxu0 0
    %298 = vmatpush2.bf16.msra.mxu0 0
    %299 = vmatprep.subr.bf16.mxu0 0
    %300 = vmatpush2.bf16.msra.mxu0 0
    %301 = vmatprep.subr.bf16.mxu0 0
    %302 = vmatpush2.bf16.msra.mxu0 0
    %303 = vmatprep.subr.bf16.mxu0 0
    %304 = vmatpush2.bf16.msra.mxu0 0
    %305 = vmatprep.subr.bf16.mxu0 0
    %306 = vmatpush2.bf16.msra.mxu0 0
    %307 = vmatprep.subr.bf16.mxu0 0
    %308 = vmatpush2.bf16.msra.mxu0 0
    %309 = vmatprep.mubr.bf16.mxu0 0
    %310 = vmatmul.mubr.bf16.gmra.mxu0 %v81
    %v311 = vpop.f32.mrf.mxu0
    %v312 = vadd.f32 0.0, %v311
    %v313 = vpop.f32.mrf.mxu0
    %v314 = vadd.f32 0.0, %v313
    %v315 = vpop.f32.mrf.mxu0
    %v316 = vadd.f32 0.0, %v315
    %v317 = vpop.f32.mrf.mxu0
    %v318 = vadd.f32 0.0, %v317
    %319 = vmatprep.mubr.bf16.mxu0 0
    %320 = vmatmul.mubr.bf16.gmra.mxu0 %v82
    %v321 = vpop.f32.mrf.mxu0
    %v322 = vadd.f32 0.0, %v321
    %v323 = vpop.f32.mrf.mxu0
    %v324 = vadd.f32 0.0, %v323
    %v325 = vpop.f32.mrf.mxu0
    %v326 = vadd.f32 0.0, %v325
    %v327 = vpop.f32.mrf.mxu0
    %v328 = vadd.f32 0.0, %v327
    %329 = vmatprep.mubr.bf16.mxu0 0
    %330 = vmatmul.mubr.bf16.gmra.mxu0 %v83
    %v331 = vpop.f32.mrf.mxu0
    %v332 = vadd.f32 0.0, %v331
    %v333 = vpop.f32.mrf.mxu0
    %v334 = vadd.f32 0.0, %v333
    %v335 = vpop.f32.mrf.mxu0
    %v336 = vadd.f32 0.0, %v335
    %v337 = vpop.f32.mrf.mxu0
    %v338 = vadd.f32 0.0, %v337
    %339 = vmatprep.mubr.bf16.mxu0 0
    %340 = vmatmul.mubr.bf16.gmra.mxu0 %v84
    %v341 = vpop.f32.mrf.mxu0
    %v342 = vadd.f32 0.0, %v341
    %v343 = vpop.f32.mrf.mxu0
    %v344 = vadd.f32 0.0, %v343
    %v345 = vpop.f32.mrf.mxu0
    %v346 = vadd.f32 0.0, %v345
    %v347 = vpop.f32.mrf.mxu0
    %v348 = vadd.f32 0.0, %v347
    %349 = vdwg.mxu0
    %350 = vmatprep.subr.bf16.mxu0 %v244
    %351 = vmatpush1.bf16.msra.mxu0 %v243
    %352 = vmatprep.subr.bf16.mxu0 %v240
    %353 = vmatpush1.bf16.msra.mxu0 %v239
    %354 = vmatprep.subr.bf16.mxu0 %v236
    %355 = vmatpush1.bf16.msra.mxu0 %v235
    %356 = vmatprep.subr.bf16.mxu0 %v232
    %357 = vmatpush1.bf16.msra.mxu0 %v231
    %358 = vmatprep.subr.bf16.mxu0 %v228
    %359 = vmatpush1.bf16.msra.mxu0 %v227
    %360 = vmatprep.subr.bf16.mxu0 %v224
    %361 = vmatpush1.bf16.msra.mxu0 %v223
    %362 = vmatprep.subr.bf16.mxu0 %v220
    %363 = vmatpush1.bf16.msra.mxu0 %v219
    %364 = vmatprep.subr.bf16.mxu0 %v216
    %365 = vmatpush1.bf16.msra.mxu0 %v215
    %366 = vmatprep.subr.bf16.mxu0 0
    %367 = vmatpush2.bf16.msra.mxu0 0
    %368 = vmatprep.subr.bf16.mxu0 0
    %369 = vmatpush2.bf16.msra.mxu0 0
    %370 = vmatprep.subr.bf16.mxu0 0
    %371 = vmatpush2.bf16.msra.mxu0 0
    %372 = vmatprep.subr.bf16.mxu0 0
    %373 = vmatpush2.bf16.msra.mxu0 0
    %374 = vmatprep.subr.bf16.mxu0 0
    %375 = vmatpush2.bf16.msra.mxu0 0
    %376 = vmatprep.subr.bf16.mxu0 0
    %377 = vmatpush2.bf16.msra.mxu0 0
    %378 = vmatprep.subr.bf16.mxu0 0
    %379 = vmatpush2.bf16.msra.mxu0 0
    %380 = vmatprep.subr.bf16.mxu0 0
    %381 = vmatpush2.bf16.msra.mxu0 0
    %382 = vmatprep.mubr.bf16.mxu0 0
    %383 = vmatmul.mubr.bf16.gmra.mxu0 %v81
    %v384 = vpop.f32.mrf.mxu0
    %v385 = vadd.f32 0.0, %v384
    %v386 = vpop.f32.mrf.mxu0
    %v387 = vadd.f32 0.0, %v386
    %v388 = vpop.f32.mrf.mxu0
    %v389 = vadd.f32 0.0, %v388
    %v390 = vpop.f32.mrf.mxu0
    %v391 = vadd.f32 0.0, %v390
    %392 = vmatprep.mubr.bf16.mxu0 0
    %393 = vmatmul.mubr.bf16.gmra.mxu0 %v82
    %v394 = vpop.f32.mrf.mxu0
    %v395 = vadd.f32 0.0, %v394
    %v396 = vpop.f32.mrf.mxu0
    %v397 = vadd.f32 0.0, %v396
    %v398 = vpop.f32.mrf.mxu0
    %v399 = vadd.f32 0.0, %v398
    %v400 = vpop.f32.mrf.mxu0
    %v401 = vadd.f32 0.0, %v400
    %402 = vmatprep.mubr.bf16.mxu0 0
    %403 = vmatmul.mubr.bf16.gmra.mxu0 %v83
    %v404 = vpop.f32.mrf.mxu0
    %v405 = vadd.f32 0.0, %v404
    %v406 = vpop.f32.mrf.mxu0
    %v407 = vadd.f32 0.0, %v406
    %v408 = vpop.f32.mrf.mxu0
    %v409 = vadd.f32 0.0, %v408
    %v410 = vpop.f32.mrf.mxu0
    %v411 = vadd.f32 0.0, %v410
    %412 = vmatprep.mubr.bf16.mxu0 0
    %413 = vmatmul.mubr.bf16.gmra.mxu0 %v84
    %v414 = vpop.f32.mrf.mxu0
    %v415 = vadd.f32 0.0, %v414
    %v416 = vpop.f32.mrf.mxu0
    %v417 = vadd.f32 0.0, %v416
    %v418 = vpop.f32.mrf.mxu0
    %v419 = vadd.f32 0.0, %v418
    %v420 = vpop.f32.mrf.mxu0
    %v421 = vadd.f32 0.0, %v420
    %422 = vdwg.mxu0
    %v423 = vld [vmem:[#allocation7] sm:$0xf]
    %v424 = vld [vmem:[%s3] sm:$0xf]
    %v425 = vadd.f32 %v312, %v314
    %v426 = vadd.f32 %v425, %v385
    %v427 = vadd.f32 %v426, %v387
    %428 = vadd.xlane.f32.xlu0 %v427
    %v429 = vpop.xlane.xlu0 %428
    %v430 = vadd.f32 %v316, %v318
    %v431 = vadd.f32 %v430, %v389
    %v432 = vadd.f32 %v431, %v391
    %433 = vadd.xlane.f32.xlu0 %v432
    %v434 = vpop.xlane.xlu0 %433
    %v435 = vadd.f32 %v322, %v324
    %v436 = vadd.f32 %v435, %v395
    %v437 = vadd.f32 %v436, %v397
    %438 = vadd.xlane.f32.xlu0 %v437
    %v439 = vpop.xlane.xlu0 %438
    %v440 = vadd.f32 %v326, %v328
    %v441 = vadd.f32 %v440, %v399
    %v442 = vadd.f32 %v441, %v401
    %443 = vadd.xlane.f32.xlu0 %v442
    %v444 = vpop.xlane.xlu0 %443
    %v445 = vadd.f32 %v332, %v334
    %v446 = vadd.f32 %v445, %v405
    %v447 = vadd.f32 %v446, %v407
    %448 = vadd.xlane.f32.xlu0 %v447
    %v449 = vpop.xlane.xlu0 %448
    %v450 = vadd.f32 %v336, %v338
    %v451 = vadd.f32 %v450, %v409
    %v452 = vadd.f32 %v451, %v411
    %453 = vadd.xlane.f32.xlu0 %v452
    %v454 = vpop.xlane.xlu0 %453
    %v455 = vadd.f32 %v342, %v344
    %v456 = vadd.f32 %v455, %v415
    %v457 = vadd.f32 %v456, %v417
    %458 = vadd.xlane.f32.xlu0 %v457
    %v459 = vpop.xlane.xlu0 %458
    %v460 = vadd.f32 %v346, %v348
    %v461 = vadd.f32 %v460, %v419
    %v462 = vadd.f32 %v461, %v421
    %463 = vadd.xlane.f32.xlu0 %v462
    %v464 = vpop.xlane.xlu0 %463
    %v465 = vmul.f32 %v429, 0.0078125
    %v466 = vmul.f32 %v434, 0.0078125
    %v467 = vmul.f32 %v439, 0.0078125
    %v468 = vmul.f32 %v444, 0.0078125
    %v469 = vmul.f32 %v449, 0.0078125
    %v470 = vmul.f32 %v454, 0.0078125
    %v471 = vmul.f32 %v459, 0.0078125
    %v472 = vmul.f32 %v464, 0.0078125
    %v473 = vsub.f32 %v312, %v465
    %v474 = vsub.f32 %v314, %v465
    %v475 = vsub.f32 %v385, %v465
    %v476 = vsub.f32 %v387, %v465
    %v477 = vsub.f32 %v316, %v466
    %v478 = vsub.f32 %v318, %v466
    %v479 = vsub.f32 %v389, %v466
    %v480 = vsub.f32 %v391, %v466
    %v481 = vsub.f32 %v322, %v467
    %v482 = vsub.f32 %v324, %v467
    %v483 = vsub.f32 %v395, %v467
    %v484 = vsub.f32 %v397, %v467
    %v485 = vsub.f32 %v326, %v468
    %v486 = vsub.f32 %v328, %v468
    %v487 = vsub.f32 %v399, %v468
    %v488 = vsub.f32 %v401, %v468
    %v489 = vsub.f32 %v332, %v469
    %v490 = vsub.f32 %v334, %v469
    %v491 = vsub.f32 %v405, %v469
    %v492 = vsub.f32 %v407, %v469
    %v493 = vsub.f32 %v336, %v470
    %v494 = vsub.f32 %v338, %v470
    %v495 = vsub.f32 %v409, %v470
    %v496 = vsub.f32 %v411, %v470
    %v497 = vsub.f32 %v342, %v471
    %v498 = vsub.f32 %v344, %v471
    %v499 = vsub.f32 %v415, %v471
    %v500 = vsub.f32 %v417, %v471
    %v501 = vsub.f32 %v346, %v472
    %v502 = vsub.f32 %v348, %v472
    %v503 = vsub.f32 %v419, %v472
    %v504 = vsub.f32 %v421, %v472
    %v505 = vmul.f32 %v473, %v473
    %v506 = vmul.f32 %v474, %v474
    %v507 = vmul.f32 %v475, %v475
    %v508 = vmul.f32 %v476, %v476
    %v509 = vmul.f32 %v477, %v477
    %v510 = vmul.f32 %v478, %v478
    %v511 = vmul.f32 %v479, %v479
    %v512 = vmul.f32 %v480, %v480
    %v513 = vmul.f32 %v481, %v481
    %v514 = vmul.f32 %v482, %v482
    %v515 = vmul.f32 %v483, %v483
    %v516 = vmul.f32 %v484, %v484
    %v517 = vmul.f32 %v485, %v485
    %v518 = vmul.f32 %v486, %v486
    %v519 = vmul.f32 %v487, %v487
    %v520 = vmul.f32 %v488, %v488
    %v521 = vmul.f32 %v489, %v489
    %v522 = vmul.f32 %v490, %v490
    %v523 = vmul.f32 %v491, %v491
    %v524 = vmul.f32 %v492, %v492
    %v525 = vmul.f32 %v493, %v493
    %v526 = vmul.f32 %v494, %v494
    %v527 = vmul.f32 %v495, %v495
    %v528 = vmul.f32 %v496, %v496
    %v529 = vmul.f32 %v497, %v497
    %v530 = vmul.f32 %v498, %v498
    %v531 = vmul.f32 %v499, %v499
    %v532 = vmul.f32 %v500, %v500
    %v533 = vmul.f32 %v501, %v501
    %v534 = vmul.f32 %v502, %v502
    %v535 = vmul.f32 %v503, %v503
    %v536 = vmul.f32 %v504, %v504
    %v537 = vadd.f32 %v505, %v506
    %v538 = vadd.f32 %v537, %v507
    %v539 = vadd.f32 %v538, %v508
    %540 = vadd.xlane.f32.xlu0 %v539
    %v541 = vpop.xlane.xlu0 %540
    %v542 = vadd.f32 %v509, %v510
    %v543 = vadd.f32 %v542, %v511
    %v544 = vadd.f32 %v543, %v512
    %545 = vadd.xlane.f32.xlu0 %v544
    %v546 = vpop.xlane.xlu0 %545
    %v547 = vadd.f32 %v513, %v514
    %v548 = vadd.f32 %v547, %v515
    %v549 = vadd.f32 %v548, %v516
    %550 = vadd.xlane.f32.xlu0 %v549
    %v551 = vpop.xlane.xlu0 %550
    %v552 = vadd.f32 %v517, %v518
    %v553 = vadd.f32 %v552, %v519
    %v554 = vadd.f32 %v553, %v520
    %555 = vadd.xlane.f32.xlu0 %v554
    %v556 = vpop.xlane.xlu0 %555
    %v557 = vadd.f32 %v521, %v522
    %v558 = vadd.f32 %v557, %v523
    %v559 = vadd.f32 %v558, %v524
    %560 = vadd.xlane.f32.xlu0 %v559
    %v561 = vpop.xlane.xlu0 %560
    %v562 = vadd.f32 %v525, %v526
    %v563 = vadd.f32 %v562, %v527
    %v564 = vadd.f32 %v563, %v528
    %565 = vadd.xlane.f32.xlu0 %v564
    %v566 = vpop.xlane.xlu0 %565
    %v567 = vadd.f32 %v529, %v530
    %v568 = vadd.f32 %v567, %v531
    %v569 = vadd.f32 %v568, %v532
    %570 = vadd.xlane.f32.xlu0 %v569
    %v571 = vpop.xlane.xlu0 %570
    %v572 = vadd.f32 %v533, %v534
    %v573 = vadd.f32 %v572, %v535
    %v574 = vadd.f32 %v573, %v536
    %575 = vadd.xlane.f32.xlu0 %v574
    %v576 = vpop.xlane.xlu0 %575
    %v577 = vmul.f32 %v465, 384.0
    %v578 = vmul.f32 %v466, 384.0
    %v579 = vmul.f32 %v467, 384.0
    %v580 = vmul.f32 %v468, 384.0
    %v581 = vmul.f32 %v469, 384.0
    %v582 = vmul.f32 %v470, 384.0
    %v583 = vmul.f32 %v471, 384.0
    %v584 = vmul.f32 %v472, 384.0
    %v585 = vmul.f32 %v577, %v465
    %v586 = vmul.f32 %v578, %v466
    %v587 = vmul.f32 %v579, %v467
    %v588 = vmul.f32 %v580, %v468
    %v589 = vmul.f32 %v581, %v469
    %v590 = vmul.f32 %v582, %v470
    %v591 = vmul.f32 %v583, %v471
    %v592 = vmul.f32 %v584, %v472
    %v593 = vsub.f32 %v541, %v585
    %v594 = vsub.f32 %v546, %v586
    %v595 = vsub.f32 %v551, %v587
    %v596 = vsub.f32 %v556, %v588
    %v597 = vsub.f32 %v561, %v589
    %v598 = vsub.f32 %v566, %v590
    %v599 = vsub.f32 %v571, %v591
    %v600 = vsub.f32 %v576, %v592
    %v601 = vmul.f32 %v593, 0.0078125
    %v602 = vmul.f32 %v594, 0.0078125
    %v603 = vmul.f32 %v595, 0.0078125
    %v604 = vmul.f32 %v596, 0.0078125
    %v605 = vmul.f32 %v597, 0.0078125
    %v606 = vmul.f32 %v598, 0.0078125
    %v607 = vmul.f32 %v599, 0.0078125
    %v608 = vmul.f32 %v600, 0.0078125
    %v609 = vmax.f32 %v601, 0.0
    %v610 = vmax.f32 %v602, 0.0
    %v611 = vmax.f32 %v603, 0.0
    %v612 = vmax.f32 %v604, 0.0
    %v613 = vmax.f32 %v605, 0.0
    %v614 = vmax.f32 %v606, 0.0
    %v615 = vmax.f32 %v607, 0.0
    %v616 = vmax.f32 %v608, 0.0
    %v617 = vadd.f32 %v609, 1e-05
    %v618 = vadd.f32 %v610, 1e-05
    %v619 = vadd.f32 %v611, 1e-05
    %v620 = vadd.f32 %v612, 1e-05
    %v621 = vadd.f32 %v613, 1e-05
    %v622 = vadd.f32 %v614, 1e-05
    %v623 = vadd.f32 %v615, 1e-05
    %v624 = vadd.f32 %v616, 1e-05
    %v625 = vrsqrt.pop %v617
    %v626 = vrsqrt.pop %v618
    %v627 = vrsqrt.pop %v619
    %v628 = vrsqrt.pop %v620
    %v629 = vrsqrt.pop %v621
    %v630 = vrsqrt.pop %v622
    %v631 = vrsqrt.pop %v623
    %v632 = vrsqrt.pop %v624
    %v633 = vmul.f32 %v473, %v625
    %v634 = vmul.f32 %v474, %v625
    %v635 = vmul.f32 %v475, %v625
    %v636 = vmul.f32 %v476, %v625
    %v637 = vmul.f32 %v477, %v626
    %v638 = vmul.f32 %v478, %v626
    %v639 = vmul.f32 %v479, %v626
    %v640 = vmul.f32 %v480, %v626
    %v641 = vmul.f32 %v481, %v627
    %v642 = vmul.f32 %v482, %v627
    %v643 = vmul.f32 %v483, %v627
    %v644 = vmul.f32 %v484, %v627
    %v645 = vmul.f32 %v485, %v628
    %v646 = vmul.f32 %v486, %v628
    %v647 = vmul.f32 %v487, %v628
    %v648 = vmul.f32 %v488, %v628
    %v649 = vmul.f32 %v489, %v629
    %v650 = vmul.f32 %v490, %v629
    %v651 = vmul.f32 %v491, %v629
    %v652 = vmul.f32 %v492, %v629
    %v653 = vmul.f32 %v493, %v630
    %v654 = vmul.f32 %v494, %v630
    %v655 = vmul.f32 %v495, %v630
    %v656 = vmul.f32 %v496, %v630
    %v657 = vmul.f32 %v497, %v631
    %v658 = vmul.f32 %v498, %v631
    %v659 = vmul.f32 %v499, %v631
    %v660 = vmul.f32 %v500, %v631
    %v661 = vmul.f32 %v501, %v632
    %v662 = vmul.f32 %v502, %v632
    %v663 = vmul.f32 %v503, %v632
    %v664 = vmul.f32 %v504, %v632
    %v666 = vlaneseq
    %v667 = vshrl.u32 %v666, 7
    %v668 = vsub.s32 0, %v667
    %v669 = vrot.slane %v423, %v668
    %v670 = vlaneseq
    %v671 = vshrl.u32 %v670, 7
    %v672 = vsub.s32 1, %v671
    %v673 = vrot.slane %v423, %v672
    %v674 = vlaneseq
    %v675 = vshrl.u32 %v674, 7
    %v676 = vsub.s32 2, %v675
    %v677 = vrot.slane %v423, %v676
    %v678 = vlaneseq
    %v679 = vshrl.u32 %v678, 7
    %v680 = vsub.s32 3, %v679
    %v681 = vrot.slane %v423, %v680
    %v686 = vmul.f32 %v633, %v669
    %v687 = vmul.f32 %v634, %v673
    %v688 = vmul.f32 %v635, %v677
    %v689 = vmul.f32 %v636, %v681
    %v690 = vmul.f32 %v637, %v669
    %v691 = vmul.f32 %v638, %v673
    %v692 = vmul.f32 %v639, %v677
    %v693 = vmul.f32 %v640, %v681
    %v694 = vmul.f32 %v641, %v669
    %v695 = vmul.f32 %v642, %v673
    %v696 = vmul.f32 %v643, %v677
    %v697 = vmul.f32 %v644, %v681
    %v698 = vmul.f32 %v645, %v669
    %v699 = vmul.f32 %v646, %v673
    %v700 = vmul.f32 %v647, %v677
    %v701 = vmul.f32 %v648, %v681
    %v702 = vmul.f32 %v649, %v669
    %v703 = vmul.f32 %v650, %v673
    %v704 = vmul.f32 %v651, %v677
    %v705 = vmul.f32 %v652, %v681
    %v706 = vmul.f32 %v653, %v669
    %v707 = vmul.f32 %v654, %v673
    %v708 = vmul.f32 %v655, %v677
    %v709 = vmul.f32 %v656, %v681
    %v710 = vmul.f32 %v657, %v669
    %v711 = vmul.f32 %v658, %v673
    %v712 = vmul.f32 %v659, %v677
    %v713 = vmul.f32 %v660, %v681
    %v714 = vmul.f32 %v661, %v669
    %v715 = vmul.f32 %v662, %v673
    %v716 = vmul.f32 %v663, %v677
    %v717 = vmul.f32 %v664, %v681
    %v719 = vlaneseq
    %v720 = vshrl.u32 %v719, 7
    %v721 = vsub.s32 0, %v720
    %v722 = vrot.slane %v424, %v721
    %v723 = vlaneseq
    %v724 = vshrl.u32 %v723, 7
    %v725 = vsub.s32 1, %v724
    %v726 = vrot.slane %v424, %v725
    %v727 = vlaneseq
    %v728 = vshrl.u32 %v727, 7
    %v729 = vsub.s32 2, %v728
    %v730 = vrot.slane %v424, %v729
    %v731 = vlaneseq
    %v732 = vshrl.u32 %v731, 7
    %v733 = vsub.s32 3, %v732
    %v734 = vrot.slane %v424, %v733
    %v739 = vadd.f32 %v686, %v722
    %v740 = vadd.f32 %v687, %v726
    %v741 = vadd.f32 %v688, %v730
    %v742 = vadd.f32 %v689, %v734
    %v743 = vadd.f32 %v690, %v722
    %v744 = vadd.f32 %v691, %v726
    %v745 = vadd.f32 %v692, %v730
    %v746 = vadd.f32 %v693, %v734
    %v747 = vadd.f32 %v694, %v722
    %v748 = vadd.f32 %v695, %v726
    %v749 = vadd.f32 %v696, %v730
    %v750 = vadd.f32 %v697, %v734
    %v751 = vadd.f32 %v698, %v722
    %v752 = vadd.f32 %v699, %v726
    %v753 = vadd.f32 %v700, %v730
    %v754 = vadd.f32 %v701, %v734
    %v755 = vadd.f32 %v702, %v722
    %v756 = vadd.f32 %v703, %v726
    %v757 = vadd.f32 %v704, %v730
    %v758 = vadd.f32 %v705, %v734
    %v759 = vadd.f32 %v706, %v722
    %v760 = vadd.f32 %v707, %v726
    %v761 = vadd.f32 %v708, %v730
    %v762 = vadd.f32 %v709, %v734
    %v763 = vadd.f32 %v710, %v722
    %v764 = vadd.f32 %v711, %v726
    %v765 = vadd.f32 %v712, %v730
    %v766 = vadd.f32 %v713, %v734
    %v767 = vadd.f32 %v714, %v722
    %v768 = vadd.f32 %v715, %v726
    %v769 = vadd.f32 %v716, %v730
    %v770 = vadd.f32 %v717, %v734
    %v771 = vld [vmem:[#allocation8] sm:$0xf]
    %v773 = vlaneseq
    %v774 = vshrl.u32 %v773, 7
    %v775 = vsub.s32 0, %v774
    %v776 = vrot.slane %v771, %v775
    %v777 = vlaneseq
    %v778 = vshrl.u32 %v777, 7
    %v779 = vsub.s32 1, %v778
    %v780 = vrot.slane %v771, %v779
    %v781 = vlaneseq
    %v782 = vshrl.u32 %v781, 7
    %v783 = vsub.s32 2, %v782
    %v784 = vrot.slane %v771, %v783
    %v785 = vlaneseq
    %v786 = vshrl.u32 %v785, 7
    %v787 = vsub.s32 3, %v786
    %v788 = vrot.slane %v771, %v787
    %v793 = vadd.f32 %v739, %v776
    %v794 = vadd.f32 %v740, %v780
    %v795 = vadd.f32 %v741, %v784
    %v796 = vadd.f32 %v742, %v788
    %v797 = vadd.f32 %v743, %v776
    %v798 = vadd.f32 %v744, %v780
    %v799 = vadd.f32 %v745, %v784
    %v800 = vadd.f32 %v746, %v788
    %v801 = vadd.f32 %v747, %v776
    %v802 = vadd.f32 %v748, %v780
    %v803 = vadd.f32 %v749, %v784
    %v804 = vadd.f32 %v750, %v788
    %v805 = vadd.f32 %v751, %v776
    %v806 = vadd.f32 %v752, %v780
    %v807 = vadd.f32 %v753, %v784
    %v808 = vadd.f32 %v754, %v788
    %v809 = vadd.f32 %v755, %v776
    %v810 = vadd.f32 %v756, %v780
    %v811 = vadd.f32 %v757, %v784
    %v812 = vadd.f32 %v758, %v788
    %v813 = vadd.f32 %v759, %v776
    %v814 = vadd.f32 %v760, %v780
    %v815 = vadd.f32 %v761, %v784
    %v816 = vadd.f32 %v762, %v788
    %v817 = vadd.f32 %v763, %v776
    %v818 = vadd.f32 %v764, %v780
    %v819 = vadd.f32 %v765, %v784
    %v820 = vadd.f32 %v766, %v788
    %v821 = vadd.f32 %v767, %v776
    %v822 = vadd.f32 %v768, %v780
    %v823 = vadd.f32 %v769, %v784
    %v824 = vadd.f32 %v770, %v788
    %825 = vst [vmem:[#allocation10] sm:$0xff] %v793
    %826 = vst [vmem:[#allocation10 + $0x8] sm:$0xff] %v794
    %827 = vst [vmem:[#allocation10 + $0x10] sm:$0xff] %v795
    %828 = vst [vmem:[#allocation10 + $0x18] sm:$0xff] %v796
    %829 = vst [vmem:[#allocation10 + $0x20] sm:$0xff] %v797
    %830 = vst [vmem:[#allocation10 + $0x28] sm:$0xff] %v798
    %831 = vst [vmem:[#allocation10 + $0x30] sm:$0xff] %v799
    %832 = vst [vmem:[#allocation10 + $0x38] sm:$0xff] %v800
    %833 = vst [vmem:[#allocation10 + $0x40] sm:$0xff] %v801
    %834 = vst [vmem:[#allocation10 + $0x48] sm:$0xff] %v802
    %835 = vst [vmem:[#allocation10 + $0x50] sm:$0xff] %v803
    %836 = vst [vmem:[#allocation10 + $0x58] sm:$0xff] %v804
    %837 = vst [vmem:[#allocation10 + $0x60] sm:$0xff] %v805
    %838 = vst [vmem:[#allocation10 + $0x68] sm:$0xff] %v806
    %839 = vst [vmem:[#allocation10 + $0x70] sm:$0xff] %v807
    %840 = vst [vmem:[#allocation10 + $0x78] sm:$0xff] %v808
    %841 = vst [vmem:[#allocation10 + $0x80] sm:$0xff] %v809
    %842 = vst [vmem:[#allocation10 + $0x88] sm:$0xff] %v810
    %843 = vst [vmem:[#allocation10 + $0x90] sm:$0xff] %v811
    %844 = vst [vmem:[#allocation10 + $0x98] sm:$0xff] %v812
    %845 = vst [vmem:[#allocation10 + $0xa0] sm:$0xff] %v813
    %846 = vst [vmem:[#allocation10 + $0xa8] sm:$0xff] %v814
    %847 = vst [vmem:[#allocation10 + $0xb0] sm:$0xff] %v815
    %848 = vst [vmem:[#allocation10 + $0xb8] sm:$0xff] %v816
    %849 = vst [vmem:[#allocation10 + $0xc0] sm:$0xff] %v817
    %850 = vst [vmem:[#allocation10 + $0xc8] sm:$0xff] %v818
    %851 = vst [vmem:[#allocation10 + $0xd0] sm:$0xff] %v819
    %852 = vst [vmem:[#allocation10 + $0xd8] sm:$0xff] %v820
    %853 = vst [vmem:[#allocation10 + $0xe0] sm:$0xff] %v821
    %854 = vst [vmem:[#allocation10 + $0xe8] sm:$0xff] %v822
    %855 = vst [vmem:[#allocation10 + $0xf0] sm:$0xff] %v823
    %856 = vst [vmem:[#allocation10 + $0xf8] sm:$0xff] %v824
    // Predicated region
    $region38: #{tpu_custom_call.1} parent=1 // pred_check
      _
    $region39: #{tpu_custom_call.1} parent=1 // pred_check_branch
      %858 = sbr.rel (0) target = $region41
    $region40: #{tpu_custom_call.1} parent=1 // pred_region
      %s860 = ssub.s32 4096, 4096
      %861 = vsyncadd [#allocation4], %s860
      %s862 = sshll.u32 [#allocation10], 4
      %s863 = int_to_ptr.vmem [resolvable:$true] %s862
      %868 = dma.vmem_to_hbm [thread:$0]  %s863, 4096, %s5, [#allocation4], 512, 512, 32
    $region41: #{tpu_custom_call.1} parent=1 // pred_fallthru
      _
    // Predicated region
    $region42: #{tpu_custom_call.1} parent=1 // pred_check
      _
    $region43: #{tpu_custom_call.1} parent=1 // pred_check_branch
      %870 = sbr.rel (0) target = $region45
    $region44: #{tpu_custom_call.1} parent=1 // pred_region
      %871 = dma.done [#allocation4], 4096
    $region45: #{tpu_custom_call.1} parent=1 // pred_fallthru
      _
    %872 = vsyncpa [#allocation3], 1
    %873 = vsyncpa [#allocation6], 1
    %874 = vsyncpa [#allocation9], 1
    %875 = vsyncpa [#allocation4], 1

</llo_original>
